<compile_context>
chip_gen: v7x
topology: tpu7x:2x2x1
jax: 0.10.0
libtpu: 0.0.40
codegen_flags: <defaults>
</compile_context>

<pallas_src>
import math

import jax
import jax.numpy as jnp
from jax.experimental import pallas as pl
from jax.experimental.pallas import tpu as pltpu

QUBITS = 4
HIDDEN = 32
LANE = 128
SUBLANE = 8


# ----------------------------------------------------------------------------
# Pallas kernel
#   o[q*8 + s, c] = sin(t[s, c] * k[q] - phase[q]) * 0.5 + 0.5
# ----------------------------------------------------------------------------
def qsnn_kernel(k_ref, phase_ref, t_ref, o_ref):
    # k_ref, phase_ref : SMEM (QUBITS,) f32  (scalar-prefetched)
    # t_ref            : VMEM (8, TB)        sublane/lane-dense batch tile
    # o_ref            : VMEM (QUBITS*8, TB) qubit-major slabs of 8 batch rows
    t = t_ref[...]                                   # (8, TB)
    for q in range(QUBITS):                          # static unroll over qubits
        val = jnp.sin(t * k_ref[q] - phase_ref[q]) * 0.5 + 0.5
        o_ref[pl.ds(q * SUBLANE, SUBLANE), :] = val.astype(o_ref.dtype)


def qsnn_forward(
    t,
    k_vec,
    phase_vec,
    *,
    lanes_per_step=32768,          # 8*32768 = 256K batch elements per grid step
    qubit_major=False,             # True -> return (QUBITS, B), skip transpose
    out_dtype=jnp.float32,         # bf16 halves HBM write traffic (useful on v5e)
    force_kernel=False,
    small_batch_threshold=4096,
):
    """t: (B,) or (B, 1) f32; k_vec/phase_vec: (QUBITS,) f32."""
    t_flat = jnp.asarray(t, jnp.float32).reshape(-1)
    B = t_flat.shape[0]

    # Small-batch fast path: kernel launch + relayouts dominate below a few
    # thousand samples; the collapsed XLA expression is strictly faster there.
    if B <= small_batch_threshold and not force_kernel:
        out_bq = (jnp.sin(t_flat[:, None] * k_vec[None, :] - phase_vec[None, :])
                  * 0.5 + 0.5).astype(out_dtype)
        return out_bq.T if qubit_major else out_bq

    # ---- tiling ------------------------------------------------------------
    cols = pl.cdiv(B, SUBLANE)                       # lane columns needed
    tb = max(LANE, min(lanes_per_step, pl.cdiv(cols, LANE) * LANE))
    # Prefer >= 2 grid steps when the batch allows it (keeps the pipeline full
    # and lets the "parallel" axis shard across both TensorCores on v7x).
    if cols > 2 * LANE and pl.cdiv(cols, tb) < 2:
        tb = pl.cdiv(pl.cdiv(cols, 2), LANE) * LANE
    cols_pad = pl.cdiv(cols, tb) * tb
    b_pad = cols_pad * SUBLANE
    grid = (cols_pad // tb,)

    # Single relayout pass: pad the tail and fold the batch onto the
    # (sublane, lane) axes.  Batch index b maps to (b // cols_pad, b % cols_pad).
    t2d = jnp.pad(t_flat, (0, b_pad - B)).reshape(SUBLANE, cols_pad)

    # Double-buffered input (8,tb) + output (QUBITS*8,tb) f32 blocks.
    vmem_needed = 2 * (SUBLANE + QUBITS * SUBLANE) * tb * 4
    vmem_limit = int(min(max(2 * vmem_needed, 16 << 20), 64 << 20))

    cost = pl.CostEstimate(
        flops=4 * b_pad * QUBITS,                    # mul, sub, scale, add
        transcendentals=b_pad * QUBITS,              # sin
        bytes_accessed=4 * b_pad * (1 + QUBITS) + 8 * QUBITS,
    )

    out2d = pl.pallas_call(
        qsnn_kernel,
        out_shape=jax.ShapeDtypeStruct((QUBITS * SUBLANE, cols_pad), out_dtype),
        grid_spec=pltpu.PrefetchScalarGridSpec(
            num_scalar_prefetch=2,                   # k_vec, phase_vec -> SMEM
            grid=grid,
            in_specs=[pl.BlockSpec((SUBLANE, tb), lambda i, k, p: (0, i))],
            out_specs=pl.BlockSpec((QUBITS * SUBLANE, tb), lambda i, k, p: (0, i)),
        ),
        compiler_params=pltpu.CompilerParams(
            dimension_semantics=("parallel",),       # megacore shard on v7x
            vmem_limit_bytes=vmem_limit,
        ),
        cost_estimate=cost,
    )(k_vec, phase_vec, t2d)

    # Unpack: out2d[q*8 + s, c] -> out_qb[q, s*cols_pad + c]; drop padded tail.
    out_qb = out2d.reshape(QUBITS, b_pad)[:, :B]
    if qubit_major:
        return out_qb                                # (QUBITS, B): no relayout
    return out_qb.T                                  # PyTorch layout (B, QUBITS)


# ----------------------------------------------------------------------------
# Deterministic parameter init (mimics kaiming_normal_ with mode='fan_out')
# ----------------------------------------------------------------------------
def kaiming_normal_fan_out(key, shape):
    fan_out = shape[0]                               # PyTorch fan_out for (out, in)
    std = math.sqrt(2.0 / fan_out)
    return std * jax.random.normal(key, shape, dtype=jnp.float32)


def init_params(key):
    k_amp, k_om, k_ph, k0, k1, k2 = jax.random.split(key, 6)
    # `amplitude` is a parameter of the PyTorch module but is never used in
    # forward(); kept for parity and likewise never used.
    amplitude = kaiming_normal_fan_out(k_amp, (1, QUBITS))
    omega = kaiming_normal_fan_out(k_om, (1, QUBITS))
    phase = kaiming_normal_fan_out(k_ph, (1, QUBITS))
    w0 = kaiming_normal_fan_out(k0, (HIDDEN, 1))         # fc0.weight (32, 1)
    w1 = kaiming_normal_fan_out(k1, (HIDDEN, HIDDEN))    # fc1.weight (32, 32)
    w2 = kaiming_normal_fan_out(k2, (QUBITS, HIDDEN))    # fc2.weight (4, 32)
    return dict(amplitude=amplitude, omega=omega, phase=phase, w0=w0, w1=w1, w2=w2)


def fold_params(params):
    """Collapse the bias-free linear chain and 100*pi*omega into one vector.

    Exact (up to f32 rounding) because the module has no inter-layer
    nonlinearity and no biases: t @ W0^T @ W1^T @ W2^T == t * w_eff.
    Folding changes f32 summation order and the 100*pi*omega scale amplifies
    that — hence the looser tolerance vs the full-chain reference below.
    """
    w_eff = params["w0"].T @ params["w1"].T @ params["w2"].T    # (1, QUBITS)
    k = 100.0 * jnp.pi * w_eff * params["omega"]                # (1, QUBITS)
    return k.reshape(QUBITS), params["phase"].reshape(QUBITS)


# ----------------------------------------------------------------------------
# References
# ----------------------------------------------------------------------------
def qsnn_reference_full(t, params):
    # Op-for-op mirror of the PyTorch forward (fc0 -> fc1 -> fc2 -> sin readout).
    t2 = jnp.asarray(t, jnp.float32).reshape(-1, 1)
    l = t2 @ params["w0"].T
    l = l @ params["w1"].T
    l = l @ params["w2"].T
    return jnp.sin(100.0 * jnp.pi * l * params["omega"] - params["phase"]) * 0.5 + 0.5


def qsnn_reference_collapsed(t, k_vec, phase_vec):
    t_flat = jnp.asarray(t, jnp.float32).reshape(-1)
    return jnp.sin(t_flat[:, None] * k_vec[None, :] - phase_vec[None, :]) * 0.5 + 0.5


if __name__ == "__main__":
    key = jax.random.PRNGKey(0)
    k_params, k_t = jax.random.split(key)
    params = init_params(k_params)
    k_vec, phase_vec = fold_params(params)

    # ---- small-shape test (B=8 scalar "time" samples, shape (B, 1)) --------
    B = 8
    t = jax.random.normal(k_t, (B, 1), dtype=jnp.float32)
    out = qsnn_forward(t, k_vec, phase_vec, force_kernel=True)
    out = jax.block_until_ready(out)
    assert out.shape == (B, QUBITS)

    # Tight check against the collapsed JAX computation (same math as kernel).
    ref_c = qsnn_reference_collapsed(t, k_vec, phase_vec)
    assert jnp.allclose(out, ref_c, atol=1e-4, rtol=1e-4), "mismatch vs collapsed reference"

    # Looser check against the op-for-op PyTorch-style chain: the 100*pi scale
    # amplifies f32 associativity differences from folding the matmuls.
    ref_f = qsnn_reference_full(t, params)
    assert jnp.allclose(out, ref_f, atol=5e-3, rtol=0.0), "mismatch vs full-chain reference"

    # ---- ragged batch exercising grid > 1 (pipelining / megacore path) -----
    # t is scaled small so sin args stay moderate and the comparison is only
    # about kernel mechanics (tiling, padding tail, unpack), not range
    # reduction differences between sin implementations.
    B2 = 3000
    t2 = 0.01 * jax.random.normal(jax.random.PRNGKey(1), (B2, 1), dtype=jnp.float32)
    out2 = jax.block_until_ready(
        qsnn_forward(t2, k_vec, phase_vec, lanes_per_step=256, force_kernel=True))
    assert out2.shape == (B2, QUBITS)
    ref2 = qsnn_reference_collapsed(t2, k_vec, phase_vec)
    assert jnp.allclose(out2, ref2, atol=1e-4, rtol=1e-4), "mismatch on tiled path"

    print("KERNEL_OK")
</pallas_src>

<mosaic_0001>
module attributes {stable_mosaic.version = 11 : i64} {
  func.func @qsnn_kernel(%arg0: i32, %arg1: memref<4xf32, #tpu.memory_space<smem>>, %arg2: memref<4xf32, #tpu.memory_space<smem>>, %arg3: memref<8x128xf32, #tpu.memory_space<vmem>>, %arg4: memref<32x128xf32, #tpu.memory_space<vmem>>) attributes {dimension_semantics = [#tpu.dimension_semantics<parallel>], iteration_bounds = array<i64: 1>, scalar_prefetch = 2 : i64, scratch_operands = 0 : i64, tpu.core_type = #tpu.core_type<tc>, window_params = [{transform_indices = @transform_0, window_bounds = array<i64: 8, 128>}, {transform_indices = @transform_1, window_bounds = array<i64: 32, 128>}]} {
    %c0 = arith.constant 0 : index
    %c0_0 = arith.constant 0 : index
    %0 = vector.load %arg3[%c0, %c0_0] : memref<8x128xf32, #tpu.memory_space<vmem>>, vector<8x128xf32>
    %c0_1 = arith.constant 0 : index
    %1 = memref.load %arg1[%c0_1] : memref<4xf32, #tpu.memory_space<smem>>
    %2 = vector.broadcast %1 : f32 to vector<8x128xf32>
    %3 = arith.mulf %0, %2 : vector<8x128xf32>
    %c0_2 = arith.constant 0 : index
    %4 = memref.load %arg2[%c0_2] : memref<4xf32, #tpu.memory_space<smem>>
    %5 = vector.broadcast %4 : f32 to vector<8x128xf32>
    %6 = arith.subf %3, %5 : vector<8x128xf32>
    %7 = math.sin %6 : vector<8x128xf32>
    %cst = arith.constant 5.000000e-01 : f32
    %8 = vector.broadcast %cst : f32 to vector<8x128xf32>
    %9 = arith.mulf %7, %8 : vector<8x128xf32>
    %cst_3 = arith.constant 5.000000e-01 : f32
    %10 = vector.broadcast %cst_3 : f32 to vector<8x128xf32>
    %11 = arith.addf %9, %10 : vector<8x128xf32>
    %c0_4 = arith.constant 0 : index
    %c0_5 = arith.constant 0 : index
    %12 = vector.load %arg4[%c0_4, %c0_5] : memref<32x128xf32, #tpu.memory_space<vmem>>, vector<8x128xf32>
    tpu.vector_store %arg4[%c0_4, %c0_5], %11 {strides = array<i32>} : memref<32x128xf32, #tpu.memory_space<vmem>>, vector<8x128xf32>,
    %c1 = arith.constant 1 : index
    %13 = memref.load %arg1[%c1] : memref<4xf32, #tpu.memory_space<smem>>
    %14 = vector.broadcast %13 : f32 to vector<8x128xf32>
    %15 = arith.mulf %0, %14 : vector<8x128xf32>
    %c1_6 = arith.constant 1 : index
    %16 = memref.load %arg2[%c1_6] : memref<4xf32, #tpu.memory_space<smem>>
    %17 = vector.broadcast %16 : f32 to vector<8x128xf32>
    %18 = arith.subf %15, %17 : vector<8x128xf32>
    %19 = math.sin %18 : vector<8x128xf32>
    %cst_7 = arith.constant 5.000000e-01 : f32
    %20 = vector.broadcast %cst_7 : f32 to vector<8x128xf32>
    %21 = arith.mulf %19, %20 : vector<8x128xf32>
    %cst_8 = arith.constant 5.000000e-01 : f32
    %22 = vector.broadcast %cst_8 : f32 to vector<8x128xf32>
    %23 = arith.addf %21, %22 : vector<8x128xf32>
    %c8 = arith.constant 8 : index
    %c0_9 = arith.constant 0 : index
    %24 = vector.load %arg4[%c8, %c0_9] : memref<32x128xf32, #tpu.memory_space<vmem>>, vector<8x128xf32>
    tpu.vector_store %arg4[%c8, %c0_9], %23 {strides = array<i32>} : memref<32x128xf32, #tpu.memory_space<vmem>>, vector<8x128xf32>,
    %c2 = arith.constant 2 : index
    %25 = memref.load %arg1[%c2] : memref<4xf32, #tpu.memory_space<smem>>
    %26 = vector.broadcast %25 : f32 to vector<8x128xf32>
    %27 = arith.mulf %0, %26 : vector<8x128xf32>
    %c2_10 = arith.constant 2 : index
    %28 = memref.load %arg2[%c2_10] : memref<4xf32, #tpu.memory_space<smem>>
    %29 = vector.broadcast %28 : f32 to vector<8x128xf32>
    %30 = arith.subf %27, %29 : vector<8x128xf32>
    %31 = math.sin %30 : vector<8x128xf32>
    %cst_11 = arith.constant 5.000000e-01 : f32
    %32 = vector.broadcast %cst_11 : f32 to vector<8x128xf32>
    %33 = arith.mulf %31, %32 : vector<8x128xf32>
    %cst_12 = arith.constant 5.000000e-01 : f32
    %34 = vector.broadcast %cst_12 : f32 to vector<8x128xf32>
    %35 = arith.addf %33, %34 : vector<8x128xf32>
    %c16 = arith.constant 16 : index
    %c0_13 = arith.constant 0 : index
    %36 = vector.load %arg4[%c16, %c0_13] : memref<32x128xf32, #tpu.memory_space<vmem>>, vector<8x128xf32>
    tpu.vector_store %arg4[%c16, %c0_13], %35 {strides = array<i32>} : memref<32x128xf32, #tpu.memory_space<vmem>>, vector<8x128xf32>,
    %c3 = arith.constant 3 : index
    %37 = memref.load %arg1[%c3] : memref<4xf32, #tpu.memory_space<smem>>
    %38 = vector.broadcast %37 : f32 to vector<8x128xf32>
    %39 = arith.mulf %0, %38 : vector<8x128xf32>
    %c3_14 = arith.constant 3 : index
    %40 = memref.load %arg2[%c3_14] : memref<4xf32, #tpu.memory_space<smem>>
    %41 = vector.broadcast %40 : f32 to vector<8x128xf32>
    %42 = arith.subf %39, %41 : vector<8x128xf32>
    %43 = math.sin %42 : vector<8x128xf32>
    %cst_15 = arith.constant 5.000000e-01 : f32
    %44 = vector.broadcast %cst_15 : f32 to vector<8x128xf32>
    %45 = arith.mulf %43, %44 : vector<8x128xf32>
    %cst_16 = arith.constant 5.000000e-01 : f32
    %46 = vector.broadcast %cst_16 : f32 to vector<8x128xf32>
    %47 = arith.addf %45, %46 : vector<8x128xf32>
    %c24 = arith.constant 24 : index
    %c0_17 = arith.constant 0 : index
    %48 = vector.load %arg4[%c24, %c0_17] : memref<32x128xf32, #tpu.memory_space<vmem>>, vector<8x128xf32>
    tpu.vector_store %arg4[%c24, %c0_17], %47 {strides = array<i32>} : memref<32x128xf32, #tpu.memory_space<vmem>>, vector<8x128xf32>,
    return
  }
  func.func @transform_0(%arg0: i32, %arg1: memref<4xf32, #tpu.memory_space<smem>>, %arg2: memref<4xf32, #tpu.memory_space<smem>>) -> (i32, i32) {
    %c0_i32 = arith.constant 0 : i32
    %c0_i32_0 = arith.constant 0 : i32
    return %c0_i32, %arg0 : i32, i32
  }
  func.func @transform_1(%arg0: i32, %arg1: memref<4xf32, #tpu.memory_space<smem>>, %arg2: memref<4xf32, #tpu.memory_space<smem>>) -> (i32, i32) {
    %c0_i32 = arith.constant 0 : i32
    %c0_i32_0 = arith.constant 0 : i32
    return %c0_i32, %arg0 : i32, i32
  }
}

</mosaic_0001>

<llo_original>
// kernel: tpu_custom_call.1
$region0: #{tpu_custom_call.1}
  #allocation0 [shape = 'u32[]', space=smem, size = 0x4, offset = 0x4, fixed_abs, tag = 'smem constant byte address 0x4 - core index']
  #allocation1 [shape = 'u32[144,128]{1,0:T(1,128)}', space=vmem, size = 0x12000, scoped, tag = 'internal scratch']
  #allocation2 [shape = 's32[1]{0}', space=sflag, size = 0x4, scoped, tag = 'scoped memory for tpu_custom_call.1']
  #allocation3 [shape = 'u8[512]{0}', space=smem, size = 0x200, scoped, tag = 'prefetched SMEM operand 0']
  #allocation4 [shape = 'u8[512]{0}', space=smem, size = 0x200, scoped, tag = 'prefetched SMEM operand 1']
  %s0 = inlined_call_operand.hbm [shape: f32[4], index: 0, kind: input, shape index: {}]
  %s1 = inlined_call_operand.vmem [shape: f32[4], index: 1, kind: input, shape index: {}]
  %s2 = inlined_call_operand.hbm [shape: f32[8,128], index: 2, kind: input, shape index: {}]
  %s3 = inlined_call_operand.hbm [shape: f32[32,128], index: 3, kind: output, shape index: {}]
  %s4 = sld [smem:[#allocation0]]
  $region18: #{tpu_custom_call.1} parent=0
    _
  %s6 = ssub.s32 1, %s4
  %s7 = scalar_select 0, %s6, %s4
  %9 = dma.hbm_to_smem %s0, 16, [#allocation3], [#allocation2]
  %s10 = sshll.u32 %s1, 4
  %s11 = int_to_ptr.vmem [resolvable:$true] %s10
  %13 = dma.vmem_to_smem %s11, 16, [#allocation4], [#allocation2]
  %14 = dma.done [#allocation2], 32
  %15 = sfence
  $region1: #{tpu_custom_call.1} parent=0
    #allocation5 [shape = 'u8[4096]{0}', space=vmem, size = 0x1000, scoped, tag = 'input window, operand 2, single buffered']
    #allocation6 [shape = 's32[1]{0}', space=sflag, size = 0x4, scoped, tag = 'scoped memory for tpu_custom_call.1']
    #allocation7 [shape = 's32[1]{0}', space=sflag, size = 0x4, scoped, tag = 'scoped memory for tpu_custom_call.1']
    #allocation8 [shape = 'u8[16384]{0}', space=vmem, size = 0x4000, scoped, tag = 'output window, operand 0, single buffered']
    %16 = vsyncpa [#allocation6], 0
    %17 = vsyncpa [#allocation7], 0
    // Predicated region
    $region2: #{tpu_custom_call.1} parent=1 // pred_check
      _
    $region3: #{tpu_custom_call.1} parent=1 // pred_check_branch
      %19 = sbr.rel (0) target = $region5
    $region4: #{tpu_custom_call.1} parent=1 // pred_region
      %s21 = ssub.s32 128, 128
      %22 = vsyncadd [#allocation6], %s21
      %s24 = sshll.u32 [#allocation5], 4
      %s25 = int_to_ptr.vmem [resolvable:$true] %s24
      %27 = dma.hbm_to_vmem [thread:$0]  %s2, 128, %s25, [#allocation6]
    $region5: #{tpu_custom_call.1} parent=1 // pred_fallthru
      _
    // Predicated region
    $region6: #{tpu_custom_call.1} parent=1 // pred_check
      _
    $region7: #{tpu_custom_call.1} parent=1 // pred_check_branch
      %29 = sbr.rel (0) target = $region9
    $region8: #{tpu_custom_call.1} parent=1 // pred_region
      %30 = dma.done [#allocation6], 128
    $region9: #{tpu_custom_call.1} parent=1 // pred_fallthru
      _
    %v31 = vld [vmem:[#allocation5] sm:$0xff]
    %s32 = sld [smem:[#allocation3]]
    %v33 = vstv %s32
    %v34 = vmul.f32 %v31, %v33
    %s35 = sld [smem:[#allocation4]]
    %v36 = vstv %s35
    %v37 = vsub.f32 %v34, %v36
    %v38 = vand.u32 2147483647, %v37
    %vm39 = vcmp.le.f32.partialorder %v38, 0.7853982
    %vm40 = vcmp.lt.s32.totalorder %v37, 0
    %v41 = vand.u32 %v37, 2139095040
    %v42 = vshrl.u32 %v41, 23
    %v43 = vsub.s32 %v42, 127
    %v44 = vand.u32 2147483647, %v37
    %v45 = vand.u32 %v44, 8388607
    %v46 = vor.u32 %v45, 8388608
    %v47 = vsub.s32 0, %v46
    %v48 = vadd.s32 %v43, 1
    %vm49 = vcmp.gt.s32.totalorder %v48, 0
    %v50 = vsel %vm49, %v48, 0
    %v51 = vshrl.u32 %v50, 5
    %v52 = vand.u32 %v50, 31
    %v53 = vsub.s32 32, %v52
    %v54 = vshrl.u32 683565275, %v53
    %v55 = vshll.u32 683565275, %v52
    %v56 = vshrl.u32 2475754826, %v53
    %v57 = vor.u32 %v55, %v56
    %v58 = vshll.u32 2475754826, %v52
    %v59 = vshrl.u32 2131351028, %v53
    %v60 = vor.u32 %v58, %v59
    %v61 = vshll.u32 2131351028, %v52
    %v62 = vshrl.u32 2102212464, %v53
    %v63 = vor.u32 %v61, %v62
    %v64 = vshll.u32 2102212464, %v52
    %v65 = vshrl.u32 920167782, %v53
    %v66 = vor.u32 %v64, %v65
    %v67 = vshll.u32 920167782, %v52
    %v68 = vshrl.u32 1326507024, %v53
    %v69 = vor.u32 %v67, %v68
    %vm70 = vcmp.lt.s32.totalorder %v51, 1
    %vm71 = vcmp.lt.s32.totalorder %v51, 2
    %vm72 = vcmp.lt.s32.totalorder %v51, 3
    %vm73 = vcmp.lt.s32.totalorder %v51, 4
    %v74 = vsel %vm70, %v54, %v57
    %v75 = vsel %vm73, %v63, 2102212464
    %v76 = vsel %vm72, %v60, %v75
    %v77 = vsel %vm71, %v74, %v76
    %v78 = vsel %vm70, %v57, %v60
    %v79 = vsel %vm73, %v66, 920167782
    %v80 = vsel %vm72, %v63, %v79
    %v81 = vsel %vm71, %v78, %v80
    %v82 = vsel %vm70, %v60, %v63
    %v83 = vsel %vm73, %v69, 1326507024
    %v84 = vsel %vm72, %v66, %v83
    %v85 = vsel %vm71, %v82, %v84
    %v86 = vshll.u32 %v46, 8
    %v87 = vmul.u32.u64.compose %v86, %v85
    %v88 = vextract.low.u32 %v87
    %v89 = vextract.high.u32 %v87
    %v90 = vmul.u32.u64.compose %v86, %v81
    %v91 = vextract.low.u32 %v90
    %v92 = vextract.high.u32 %v90
    %v93 = vmul.u32 %v86, %v77
    %v94 = vadd.s32 %v89, %v91
    %vm95 = vc.u32 %v89, %v91
    %v96 = vadd.s32 %v92, 1
    %v97 = vsel %vm95, %v96, %v92
    %v98 = vadd.s32 %v93, %v97
    %v99 = vadd.s32 %v98, 536870912
    %v100 = vshrl.u32 %v99, 30
    %v101 = vshll.u32 %v100, 30
    %v102 = vsub.s32 %v98, %v101
    %vm103 = vcmp.lt.s32.totalorder %v102, 0
    %v104 = vsub.s32 0, %v102
    %v105 = vsel %vm103, %v104, %v102
    %v106 = vclz %v105
    %v107 = vsub.s32 %v106, 2
    %vm108 = vcmp.gt.s32.totalorder 0, %v107
    %v109 = vsel %vm108, 0, %v107
    %v110 = vsub.s32 32, %v109
    %v111 = vshll.u32 %v102, %v109
    %v112 = vshrl.u32 %v94, %v110
    %v113 = vor.u32 %v111, %v112
    %v114 = vsub.s32 4294967266, %v109
    %v115 = vadd.s32 %v114, 127
    %v116 = vshll.u32 %v115, 23
    %v117 = vor.u32 4788187, %v116
    %v118 = vand.u32 2147483647, %v117
    %v120 = vcvt.s32.f32 %v113
    %v121 = vmul.f32 %v120, %v118
    %v122 = vxor.u32 %v121, 2147483648
    %v123 = vsel %vm40, %v122, %v121
    %v124 = vsub.s32 4, %v100
    %v125 = vsel %vm40, %v124, %v100
    %v126 = vsel %vm39, %v37, %v123
    %v127 = vsel %vm39, 0, %v125
    %v128 = vcosq.f32.pop %v126
    %v129 = vsinq.f32.pop %v126
    %vm130 = vweird.f32 %v37
    %v131 = vadd.s32 %v127, 3
    %v132 = vand.u32 %v131, 3
    %vm133 = vcmp.lt.s32.totalorder %v132, 2
    %vm134 = vcmp.eq.s32.totalorder %v132, 0
    %v135 = vxor.u32 %v129, 2147483648
    %v136 = vsel %vm134, %v128, %v135
    %vm137 = vcmp.eq.s32.totalorder %v132, 2
    %v138 = vxor.u32 %v128, 2147483648
    %v139 = vsel %vm137, %v138, %v129
    %v140 = vsel %vm133, %v136, %v139
    %v141 = vsel %vm130, nan, %v140
    %v142 = vmul.f32 %v141, 0.5
    %v143 = vadd.f32 %v142, 0.5
    %144 = vst [vmem:[#allocation8] sm:$0xff] %v143
    %s145 = sld [smem:[#allocation3 + $0x1]]
    %v146 = vstv %s145
    %v147 = vmul.f32 %v31, %v146
    %s148 = sld [smem:[#allocation4 + $0x1]]
    %v149 = vstv %s148
    %v150 = vsub.f32 %v147, %v149
    %v151 = vand.u32 2147483647, %v150
    %vm152 = vcmp.le.f32.partialorder %v151, 0.7853982
    %vm153 = vcmp.lt.s32.totalorder %v150, 0
    %v154 = vand.u32 %v150, 2139095040
    %v155 = vshrl.u32 %v154, 23
    %v156 = vsub.s32 %v155, 127
    %v157 = vand.u32 2147483647, %v150
    %v158 = vand.u32 %v157, 8388607
    %v159 = vor.u32 %v158, 8388608
    %v160 = vsub.s32 0, %v159
    %v161 = vadd.s32 %v156, 1
    %vm162 = vcmp.gt.s32.totalorder %v161, 0
    %v163 = vsel %vm162, %v161, 0
    %v164 = vshrl.u32 %v163, 5
    %v165 = vand.u32 %v163, 31
    %v166 = vsub.s32 32, %v165
    %v167 = vshrl.u32 683565275, %v166
    %v168 = vshll.u32 683565275, %v165
    %v169 = vshrl.u32 2475754826, %v166
    %v170 = vor.u32 %v168, %v169
    %v171 = vshll.u32 2475754826, %v165
    %v172 = vshrl.u32 2131351028, %v166
    %v173 = vor.u32 %v171, %v172
    %v174 = vshll.u32 2131351028, %v165
    %v175 = vshrl.u32 2102212464, %v166
    %v176 = vor.u32 %v174, %v175
    %v177 = vshll.u32 2102212464, %v165
    %v178 = vshrl.u32 920167782, %v166
    %v179 = vor.u32 %v177, %v178
    %v180 = vshll.u32 920167782, %v165
    %v181 = vshrl.u32 1326507024, %v166
    %v182 = vor.u32 %v180, %v181
    %vm183 = vcmp.lt.s32.totalorder %v164, 1
    %vm184 = vcmp.lt.s32.totalorder %v164, 2
    %vm185 = vcmp.lt.s32.totalorder %v164, 3
    %vm186 = vcmp.lt.s32.totalorder %v164, 4
    %v187 = vsel %vm183, %v167, %v170
    %v188 = vsel %vm186, %v176, 2102212464
    %v189 = vsel %vm185, %v173, %v188
    %v190 = vsel %vm184, %v187, %v189
    %v191 = vsel %vm183, %v170, %v173
    %v192 = vsel %vm186, %v179, 920167782
    %v193 = vsel %vm185, %v176, %v192
    %v194 = vsel %vm184, %v191, %v193
    %v195 = vsel %vm183, %v173, %v176
    %v196 = vsel %vm186, %v182, 1326507024
    %v197 = vsel %vm185, %v179, %v196
    %v198 = vsel %vm184, %v195, %v197
    %v199 = vshll.u32 %v159, 8
    %v200 = vmul.u32.u64.compose %v199, %v198
    %v201 = vextract.low.u32 %v200
    %v202 = vextract.high.u32 %v200
    %v203 = vmul.u32.u64.compose %v199, %v194
    %v204 = vextract.low.u32 %v203
    %v205 = vextract.high.u32 %v203
    %v206 = vmul.u32 %v199, %v190
    %v207 = vadd.s32 %v202, %v204
    %vm208 = vc.u32 %v202, %v204
    %v209 = vadd.s32 %v205, 1
    %v210 = vsel %vm208, %v209, %v205
    %v211 = vadd.s32 %v206, %v210
    %v212 = vadd.s32 %v211, 536870912
    %v213 = vshrl.u32 %v212, 30
    %v214 = vshll.u32 %v213, 30
    %v215 = vsub.s32 %v211, %v214
    %vm216 = vcmp.lt.s32.totalorder %v215, 0
    %v217 = vsub.s32 0, %v215
    %v218 = vsel %vm216, %v217, %v215
    %v219 = vclz %v218
    %v220 = vsub.s32 %v219, 2
    %vm221 = vcmp.gt.s32.totalorder 0, %v220
    %v222 = vsel %vm221, 0, %v220
    %v223 = vsub.s32 32, %v222
    %v224 = vshll.u32 %v215, %v222
    %v225 = vshrl.u32 %v207, %v223
    %v226 = vor.u32 %v224, %v225
    %v227 = vsub.s32 4294967266, %v222
    %v228 = vadd.s32 %v227, 127
    %v229 = vshll.u32 %v228, 23
    %v230 = vor.u32 4788187, %v229
    %v231 = vand.u32 2147483647, %v230
    %v233 = vcvt.s32.f32 %v226
    %v234 = vmul.f32 %v233, %v231
    %v235 = vxor.u32 %v234, 2147483648
    %v236 = vsel %vm153, %v235, %v234
    %v237 = vsub.s32 4, %v213
    %v238 = vsel %vm153, %v237, %v213
    %v239 = vsel %vm152, %v150, %v236
    %v240 = vsel %vm152, 0, %v238
    %v241 = vcosq.f32.pop %v239
    %v242 = vsinq.f32.pop %v239
    %vm243 = vweird.f32 %v150
    %v244 = vadd.s32 %v240, 3
    %v245 = vand.u32 %v244, 3
    %vm246 = vcmp.lt.s32.totalorder %v245, 2
    %vm247 = vcmp.eq.s32.totalorder %v245, 0
    %v248 = vxor.u32 %v242, 2147483648
    %v249 = vsel %vm247, %v241, %v248
    %vm250 = vcmp.eq.s32.totalorder %v245, 2
    %v251 = vxor.u32 %v241, 2147483648
    %v252 = vsel %vm250, %v251, %v242
    %v253 = vsel %vm246, %v249, %v252
    %v254 = vsel %vm243, nan, %v253
    %v255 = vmul.f32 %v254, 0.5
    %v256 = vadd.f32 %v255, 0.5
    %257 = vst [vmem:[#allocation8 + $0x8] sm:$0xff] %v256
    %s258 = sld [smem:[#allocation3 + $0x2]]
    %v259 = vstv %s258
    %v260 = vmul.f32 %v31, %v259
    %s261 = sld [smem:[#allocation4 + $0x2]]
    %v262 = vstv %s261
    %v263 = vsub.f32 %v260, %v262
    %v264 = vand.u32 2147483647, %v263
    %vm265 = vcmp.le.f32.partialorder %v264, 0.7853982
    %vm266 = vcmp.lt.s32.totalorder %v263, 0
    %v267 = vand.u32 %v263, 2139095040
    %v268 = vshrl.u32 %v267, 23
    %v269 = vsub.s32 %v268, 127
    %v270 = vand.u32 2147483647, %v263
    %v271 = vand.u32 %v270, 8388607
    %v272 = vor.u32 %v271, 8388608
    %v273 = vsub.s32 0, %v272
    %v274 = vadd.s32 %v269, 1
    %vm275 = vcmp.gt.s32.totalorder %v274, 0
    %v276 = vsel %vm275, %v274, 0
    %v277 = vshrl.u32 %v276, 5
    %v278 = vand.u32 %v276, 31
    %v279 = vsub.s32 32, %v278
    %v280 = vshrl.u32 683565275, %v279
    %v281 = vshll.u32 683565275, %v278
    %v282 = vshrl.u32 2475754826, %v279
    %v283 = vor.u32 %v281, %v282
    %v284 = vshll.u32 2475754826, %v278
    %v285 = vshrl.u32 2131351028, %v279
    %v286 = vor.u32 %v284, %v285
    %v287 = vshll.u32 2131351028, %v278
    %v288 = vshrl.u32 2102212464, %v279
    %v289 = vor.u32 %v287, %v288
    %v290 = vshll.u32 2102212464, %v278
    %v291 = vshrl.u32 920167782, %v279
    %v292 = vor.u32 %v290, %v291
    %v293 = vshll.u32 920167782, %v278
    %v294 = vshrl.u32 1326507024, %v279
    %v295 = vor.u32 %v293, %v294
    %vm296 = vcmp.lt.s32.totalorder %v277, 1
    %vm297 = vcmp.lt.s32.totalorder %v277, 2
    %vm298 = vcmp.lt.s32.totalorder %v277, 3
    %vm299 = vcmp.lt.s32.totalorder %v277, 4
    %v300 = vsel %vm296, %v280, %v283
    %v301 = vsel %vm299, %v289, 2102212464
    %v302 = vsel %vm298, %v286, %v301
    %v303 = vsel %vm297, %v300, %v302
    %v304 = vsel %vm296, %v283, %v286
    %v305 = vsel %vm299, %v292, 920167782
    %v306 = vsel %vm298, %v289, %v305
    %v307 = vsel %vm297, %v304, %v306
    %v308 = vsel %vm296, %v286, %v289
    %v309 = vsel %vm299, %v295, 1326507024
    %v310 = vsel %vm298, %v292, %v309
    %v311 = vsel %vm297, %v308, %v310
    %v312 = vshll.u32 %v272, 8
    %v313 = vmul.u32.u64.compose %v312, %v311
    %v314 = vextract.low.u32 %v313
    %v315 = vextract.high.u32 %v313
    %v316 = vmul.u32.u64.compose %v312, %v307
    %v317 = vextract.low.u32 %v316
    %v318 = vextract.high.u32 %v316
    %v319 = vmul.u32 %v312, %v303
    %v320 = vadd.s32 %v315, %v317
    %vm321 = vc.u32 %v315, %v317
    %v322 = vadd.s32 %v318, 1
    %v323 = vsel %vm321, %v322, %v318
    %v324 = vadd.s32 %v319, %v323
    %v325 = vadd.s32 %v324, 536870912
    %v326 = vshrl.u32 %v325, 30
    %v327 = vshll.u32 %v326, 30
    %v328 = vsub.s32 %v324, %v327
    %vm329 = vcmp.lt.s32.totalorder %v328, 0
    %v330 = vsub.s32 0, %v328
    %v331 = vsel %vm329, %v330, %v328
    %v332 = vclz %v331
    %v333 = vsub.s32 %v332, 2
    %vm334 = vcmp.gt.s32.totalorder 0, %v333
    %v335 = vsel %vm334, 0, %v333
    %v336 = vsub.s32 32, %v335
    %v337 = vshll.u32 %v328, %v335
    %v338 = vshrl.u32 %v320, %v336
    %v339 = vor.u32 %v337, %v338
    %v340 = vsub.s32 4294967266, %v335
    %v341 = vadd.s32 %v340, 127
    %v342 = vshll.u32 %v341, 23
    %v343 = vor.u32 4788187, %v342
    %v344 = vand.u32 2147483647, %v343
    %v346 = vcvt.s32.f32 %v339
    %v347 = vmul.f32 %v346, %v344
    %v348 = vxor.u32 %v347, 2147483648
    %v349 = vsel %vm266, %v348, %v347
    %v350 = vsub.s32 4, %v326
    %v351 = vsel %vm266, %v350, %v326
    %v352 = vsel %vm265, %v263, %v349
    %v353 = vsel %vm265, 0, %v351
    %v354 = vcosq.f32.pop %v352
    %v355 = vsinq.f32.pop %v352
    %vm356 = vweird.f32 %v263
    %v357 = vadd.s32 %v353, 3
    %v358 = vand.u32 %v357, 3
    %vm359 = vcmp.lt.s32.totalorder %v358, 2
    %vm360 = vcmp.eq.s32.totalorder %v358, 0
    %v361 = vxor.u32 %v355, 2147483648
    %v362 = vsel %vm360, %v354, %v361
    %vm363 = vcmp.eq.s32.totalorder %v358, 2
    %v364 = vxor.u32 %v354, 2147483648
    %v365 = vsel %vm363, %v364, %v355
    %v366 = vsel %vm359, %v362, %v365
    %v367 = vsel %vm356, nan, %v366
    %v368 = vmul.f32 %v367, 0.5
    %v369 = vadd.f32 %v368, 0.5
    %370 = vst [vmem:[#allocation8 + $0x10] sm:$0xff] %v369
    %s371 = sld [smem:[#allocation3 + $0x3]]
    %v372 = vstv %s371
    %v373 = vmul.f32 %v31, %v372
    %s374 = sld [smem:[#allocation4 + $0x3]]
    %v375 = vstv %s374
    %v376 = vsub.f32 %v373, %v375
    %v377 = vand.u32 2147483647, %v376
    %vm378 = vcmp.le.f32.partialorder %v377, 0.7853982
    %vm379 = vcmp.lt.s32.totalorder %v376, 0
    %v380 = vand.u32 %v376, 2139095040
    %v381 = vshrl.u32 %v380, 23
    %v382 = vsub.s32 %v381, 127
    %v383 = vand.u32 2147483647, %v376
    %v384 = vand.u32 %v383, 8388607
    %v385 = vor.u32 %v384, 8388608
    %v386 = vsub.s32 0, %v385
    %v387 = vadd.s32 %v382, 1
    %vm388 = vcmp.gt.s32.totalorder %v387, 0
    %v389 = vsel %vm388, %v387, 0
    %v390 = vshrl.u32 %v389, 5
    %v391 = vand.u32 %v389, 31
    %v392 = vsub.s32 32, %v391
    %v393 = vshrl.u32 683565275, %v392
    %v394 = vshll.u32 683565275, %v391
    %v395 = vshrl.u32 2475754826, %v392
    %v396 = vor.u32 %v394, %v395
    %v397 = vshll.u32 2475754826, %v391
    %v398 = vshrl.u32 2131351028, %v392
    %v399 = vor.u32 %v397, %v398
    %v400 = vshll.u32 2131351028, %v391
    %v401 = vshrl.u32 2102212464, %v392
    %v402 = vor.u32 %v400, %v401
    %v403 = vshll.u32 2102212464, %v391
    %v404 = vshrl.u32 920167782, %v392
    %v405 = vor.u32 %v403, %v404
    %v406 = vshll.u32 920167782, %v391
    %v407 = vshrl.u32 1326507024, %v392
    %v408 = vor.u32 %v406, %v407
    %vm409 = vcmp.lt.s32.totalorder %v390, 1
    %vm410 = vcmp.lt.s32.totalorder %v390, 2
    %vm411 = vcmp.lt.s32.totalorder %v390, 3
    %vm412 = vcmp.lt.s32.totalorder %v390, 4
    %v413 = vsel %vm409, %v393, %v396
    %v414 = vsel %vm412, %v402, 2102212464
    %v415 = vsel %vm411, %v399, %v414
    %v416 = vsel %vm410, %v413, %v415
    %v417 = vsel %vm409, %v396, %v399
    %v418 = vsel %vm412, %v405, 920167782
    %v419 = vsel %vm411, %v402, %v418
    %v420 = vsel %vm410, %v417, %v419
    %v421 = vsel %vm409, %v399, %v402
    %v422 = vsel %vm412, %v408, 1326507024
    %v423 = vsel %vm411, %v405, %v422
    %v424 = vsel %vm410, %v421, %v423
    %v425 = vshll.u32 %v385, 8
    %v426 = vmul.u32.u64.compose %v425, %v424
    %v427 = vextract.low.u32 %v426
    %v428 = vextract.high.u32 %v426
    %v429 = vmul.u32.u64.compose %v425, %v420
    %v430 = vextract.low.u32 %v429
    %v431 = vextract.high.u32 %v429
    %v432 = vmul.u32 %v425, %v416
    %v433 = vadd.s32 %v428, %v430
    %vm434 = vc.u32 %v428, %v430
    %v435 = vadd.s32 %v431, 1
    %v436 = vsel %vm434, %v435, %v431
    %v437 = vadd.s32 %v432, %v436
    %v438 = vadd.s32 %v437, 536870912
    %v439 = vshrl.u32 %v438, 30
    %v440 = vshll.u32 %v439, 30
    %v441 = vsub.s32 %v437, %v440
    %vm442 = vcmp.lt.s32.totalorder %v441, 0
    %v443 = vsub.s32 0, %v441
    %v444 = vsel %vm442, %v443, %v441
    %v445 = vclz %v444
    %v446 = vsub.s32 %v445, 2
    %vm447 = vcmp.gt.s32.totalorder 0, %v446
    %v448 = vsel %vm447, 0, %v446
    %v449 = vsub.s32 32, %v448
    %v450 = vshll.u32 %v441, %v448
    %v451 = vshrl.u32 %v433, %v449
    %v452 = vor.u32 %v450, %v451
    %v453 = vsub.s32 4294967266, %v448
    %v454 = vadd.s32 %v453, 127
    %v455 = vshll.u32 %v454, 23
    %v456 = vor.u32 4788187, %v455
    %v457 = vand.u32 2147483647, %v456
    %v459 = vcvt.s32.f32 %v452
    %v460 = vmul.f32 %v459, %v457
    %v461 = vxor.u32 %v460, 2147483648
    %v462 = vsel %vm379, %v461, %v460
    %v463 = vsub.s32 4, %v439
    %v464 = vsel %vm379, %v463, %v439
    %v465 = vsel %vm378, %v376, %v462
    %v466 = vsel %vm378, 0, %v464
    %v467 = vcosq.f32.pop %v465
    %v468 = vsinq.f32.pop %v465
    %vm469 = vweird.f32 %v376
    %v470 = vadd.s32 %v466, 3
    %v471 = vand.u32 %v470, 3
    %vm472 = vcmp.lt.s32.totalorder %v471, 2
    %vm473 = vcmp.eq.s32.totalorder %v471, 0
    %v474 = vxor.u32 %v468, 2147483648
    %v475 = vsel %vm473, %v467, %v474
    %vm476 = vcmp.eq.s32.totalorder %v471, 2
    %v477 = vxor.u32 %v467, 2147483648
    %v478 = vsel %vm476, %v477, %v468
    %v479 = vsel %vm472, %v475, %v478
    %v480 = vsel %vm469, nan, %v479
    %v481 = vmul.f32 %v480, 0.5
    %v482 = vadd.f32 %v481, 0.5
    %483 = vst [vmem:[#allocation8 + $0x18] sm:$0xff] %v482
    // Predicated region
    $region10: #{tpu_custom_call.1} parent=1 // pred_check
      _
    $region11: #{tpu_custom_call.1} parent=1 // pred_check_branch
      %485 = sbr.rel (0) target = $region13
    $region12: #{tpu_custom_call.1} parent=1 // pred_region
      %s487 = ssub.s32 512, 512
      %488 = vsyncadd [#allocation7], %s487
      %s489 = sshll.u32 [#allocation8], 4
      %s490 = int_to_ptr.vmem [resolvable:$true] %s489
      %495 = dma.vmem_to_hbm [thread:$0]  %s490, 512, %s3, [#allocation7], 128, 128, 8
    $region13: #{tpu_custom_call.1} parent=1 // pred_fallthru
      _
    // Predicated region
    $region14: #{tpu_custom_call.1} parent=1 // pred_check
      _
    $region15: #{tpu_custom_call.1} parent=1 // pred_check_branch
      %497 = sbr.rel (0) target = $region17
    $region16: #{tpu_custom_call.1} parent=1 // pred_region
      %498 = dma.done [#allocation7], 512
    $region17: #{tpu_custom_call.1} parent=1 // pred_fallthru
      _
    %499 = vsyncpa [#allocation6], 1
    %500 = vsyncpa [#allocation7], 1

</llo_original>
